<compile_context>
chip_gen: v6e
topology: v6e:2x2x1
jax: 0.10.0
libtpu: 0.0.40
codegen_flags: <defaults>
</compile_context>

<pallas_src>
import functools
import math
from typing import NamedTuple

import jax
import jax.numpy as jnp
from jax.experimental import pallas as pl
from jax.experimental.pallas import tpu as pltpu


def _round_up(n, m):
    return ((n + m - 1) // m) * m


def _choose_tk(d_pad, tk_max):
    """Largest multiple of 128 that divides d_pad and is <= tk_max."""
    if d_pad <= tk_max:
        return d_pad
    best = 128
    t = 128
    while t <= tk_max:
        if d_pad % t == 0:
            best = t
        t += 128
    return best


class PackedVAEEncoderParams(NamedTuple):
    w1: jax.Array     # (D_pad, H1_pad) compute dtype, zero-padded
    w2: jax.Array     # (H1_pad, H2_pad)
    wh: jax.Array     # (H2_pad, N_head)  fused [w_mu | w_logvar | 0-pad]
    bias: jax.Array   # (1, H1_pad + H2_pad + N_head) float32, packed biases
    input_dim: int
    latent_dim: int


def pack_params(params, input_dim, *, compute_dtype=jnp.float32):
    """One-time host-side packing (hoisted out of the per-call forward path)."""
    (w1, b1), (w2, b2), (wmu, bmu), (wlv, blv) = params
    latent_dim = int(wmu.shape[1])
    D = int(input_dim)
    H1 = int(w1.shape[1])
    H2 = int(w2.shape[1])
    assert w1.shape[0] == D

    D_pad = _round_up(D, 128)
    H1_pad = _round_up(H1, 128)
    H2_pad = _round_up(H2, 128)
    N_head = _round_up(2 * latent_dim, 128)

    w1_p = jnp.zeros((D_pad, H1_pad), jnp.float32).at[:D, :H1].set(w1)
    w2_p = jnp.zeros((H1_pad, H2_pad), jnp.float32).at[:H1, :H2].set(w2)
    w_head = jnp.concatenate([wmu, wlv], axis=1)                 # (H2, 2*latent)
    wh_p = jnp.zeros((H2_pad, N_head), jnp.float32).at[:H2, :2 * latent_dim].set(w_head)

    off2 = H1_pad
    offh = H1_pad + H2_pad
    bias = jnp.zeros((1, H1_pad + H2_pad + N_head), jnp.float32)
    bias = bias.at[:, :H1].set(b1.reshape(1, -1))
    bias = bias.at[:, off2:off2 + H2].set(b2.reshape(1, -1))
    bias = bias.at[:, offh:offh + latent_dim].set(bmu.reshape(1, -1))
    bias = bias.at[:, offh + latent_dim:offh + 2 * latent_dim].set(blv.reshape(1, -1))

    return PackedVAEEncoderParams(
        w1=w1_p.astype(compute_dtype),
        w2=w2_p.astype(compute_dtype),
        wh=wh_p.astype(compute_dtype),
        bias=bias,
        input_dim=D,
        latent_dim=latent_dim,
    )


def vae_encoder_kernel(x_ref, w1_ref, w2_ref, wh_ref, b_ref, out_ref, acc_ref,
                       *, latent_dim, h1_pad, h2_pad):
    k = pl.program_id(1)

    @pl.when(k == 0)
    def _():
        acc_ref[...] = jnp.zeros_like(acc_ref)

    # layer 1 partial sum over the K-streamed input_dim tile (f32 accumulate).
    acc_ref[...] += jnp.dot(x_ref[...], w1_ref[...],
                            preferred_element_type=jnp.float32)

    @pl.when(k == pl.num_programs(1) - 1)
    def _():
        b1 = b_ref[:, 0:h1_pad]
        b2 = b_ref[:, h1_pad:h1_pad + h2_pad]
        bh = b_ref[:, h1_pad + h2_pad:]
        # hidden layer 1 epilogue: ReLU(acc + b1)
        h = jnp.maximum(acc_ref[...] + b1, 0.0).astype(w2_ref.dtype)
        # hidden layer 2: ReLU(h @ W2 + b2)
        h = jnp.dot(h, w2_ref[...], preferred_element_type=jnp.float32)
        h = jnp.maximum(h + b2, 0.0).astype(wh_ref.dtype)
        # fused heads: [mu | logvar | zero-pad] in one lane-dense matmul
        z = jnp.dot(h, wh_ref[...], preferred_element_type=jnp.float32) + bh
        # clamp logvar lanes only (padded lanes are zero; clip(0) is a no-op)
        col = jax.lax.broadcasted_iota(jnp.int32, z.shape, dimension=1)
        out_ref[...] = jnp.where(col >= latent_dim,
                                 jnp.clip(z, -10.0, 10.0), z).astype(out_ref.dtype)


def vae_encoder_forward(x_nchw, packed: PackedVAEEncoderParams,
                        *, tk_max=512, tm_max=128):
    """x_nchw: (B, C, H, W). Returns (mu, logvar), each (B, latent_dim)."""
    B = x_nchw.shape[0]
    x = x_nchw.reshape(B, -1)                      # torch x.view(B, -1)
    D = x.shape[1]
    assert D == packed.input_dim

    D_pad, H1_pad = packed.w1.shape
    H2_pad = packed.w2.shape[1]
    N_head = packed.wh.shape[1]
    latent_dim = packed.latent_dim
    compute_dtype = packed.w1.dtype

    x = x.astype(compute_dtype)
    if D != D_pad:
        # only needed when input_dim is not lane-aligned (not the case here)
        x = jnp.pad(x, ((0, 0), (0, D_pad - D)))

    # batch tiling: small batches run as one full-B block (no padding copy),
    # large batches tile at tm_max rows per "parallel" grid step.
    if B <= tm_max:
        tm = B
        grid_m = 1
    else:
        tm = tm_max
        grid_m = pl.cdiv(B, tm)

    # K-reduction tiling over input_dim (tk_max is the per-chip VMEM knob).
    tk = _choose_tk(D_pad, tk_max)
    grid_k = D_pad // tk

    kernel = functools.partial(vae_encoder_kernel, latent_dim=latent_dim,
                               h1_pad=H1_pad, h2_pad=H2_pad)

    out = pl.pallas_call(
        kernel,
        out_shape=jax.ShapeDtypeStruct((B, N_head), jnp.float32),
        grid=(grid_m, grid_k),
        in_specs=[
            pl.BlockSpec((tm, tk), lambda i, k: (i, k)),        # x tile (K-streamed)
            pl.BlockSpec((tk, H1_pad), lambda i, k: (k, 0)),    # w1 tile (K-streamed)
            pl.BlockSpec((H1_pad, H2_pad), lambda i, k: (0, 0)),  # w2 resident
            pl.BlockSpec((H2_pad, N_head), lambda i, k: (0, 0)),  # fused head resident
            pl.BlockSpec((1, H1_pad + H2_pad + N_head), lambda i, k: (0, 0)),  # biases
        ],
        out_specs=pl.BlockSpec((tm, N_head), lambda i, k: (i, 0)),
        scratch_shapes=[pltpu.VMEM((tm, H1_pad), jnp.float32)],   # layer-1 accumulator
        compiler_params=pltpu.CompilerParams(
            dimension_semantics=("parallel", "arbitrary")),
    )(x, packed.w1, packed.w2, packed.wh, packed.bias)

    mu = out[:, :latent_dim]
    logvar = out[:, latent_dim:2 * latent_dim]
    return mu, logvar


# ----------------------- reference / init helpers ---------------------------

def xavier_normal(key, fan_in, fan_out, gain=1.0):
    # Matches nn.init.xavier_normal_ on a (out, in) weight; returned as (in, out).
    std = gain * math.sqrt(2.0 / (fan_in + fan_out))
    return std * jax.random.normal(key, (fan_in, fan_out), dtype=jnp.float32)


def make_params(key, input_dim, hidden_dims, latent_dim):
    keys = jax.random.split(key, len(hidden_dims) + 2)
    params = []
    in_size = input_dim
    for i, h in enumerate(hidden_dims):
        w = xavier_normal(keys[i], in_size, h, gain=1.0)
        b = jnp.zeros((1, h), dtype=jnp.float32)
        params.append((w, b))
        in_size = h
    wmu = xavier_normal(keys[-2], in_size, latent_dim, gain=0.01)
    bmu = jnp.zeros((1, latent_dim), dtype=jnp.float32)
    wlv = xavier_normal(keys[-1], in_size, latent_dim, gain=0.01)
    blv = jnp.full((1, latent_dim), -5.0, dtype=jnp.float32)
    params.append((wmu, bmu))
    params.append((wlv, blv))
    return tuple(params)


def reference_forward(x_nchw, params):
    x = x_nchw.reshape(x_nchw.shape[0], -1)
    (w1, b1), (w2, b2), (wmu, bmu), (wlv, blv) = params
    h = jnp.maximum(x @ w1 + b1, 0.0)
    h = jnp.maximum(h @ w2 + b2, 0.0)
    mu = h @ wmu + bmu
    logvar = jnp.clip(h @ wlv + blv, -10.0, 10.0)
    return mu, logvar


if __name__ == "__main__":
    # Small shapes consistent with the module: (2, 1, 16, 16) "images"
    # flattened to input_dim=256, hidden_dims=[128, 64], latent_dim=32.
    key = jax.random.PRNGKey(0)
    kx, kp, kx2 = jax.random.split(key, 3)

    B, C, H, W = 2, 1, 16, 16
    input_dim = C * H * W
    hidden_dims = [128, 64]
    latent_dim = 32

    x = jax.random.normal(kx, (B, C, H, W), dtype=jnp.float32)
    params = make_params(kp, input_dim, hidden_dims, latent_dim)

    # One-time parameter packing, hoisted out of the forward path.
    packed_f32 = pack_params(params, input_dim, compute_dtype=jnp.float32)
    packed_bf16 = pack_params(params, input_dim, compute_dtype=jnp.bfloat16)

    mu_ref, logvar_ref = reference_forward(x, params)

    # f32 operand path (tight check vs. reference).
    mu, logvar = vae_encoder_forward(x, packed_f32)
    jax.block_until_ready((mu, logvar))
    assert mu.shape == (B, latent_dim) and logvar.shape == (B, latent_dim)
    assert jnp.allclose(mu, mu_ref, atol=1e-5, rtol=1e-5)
    assert jnp.allclose(logvar, logvar_ref, atol=1e-5, rtol=1e-5)

    # bf16 operand path (full-rate MXU, f32 accumulation) -- relaxed tolerance.
    mu_bf, logvar_bf = vae_encoder_forward(x, packed_bf16)
    jax.block_until_ready((mu_bf, logvar_bf))
    assert jnp.allclose(mu_bf, mu_ref, atol=3e-2, rtol=3e-2)
    assert jnp.allclose(logvar_bf, logvar_ref, atol=3e-2, rtol=3e-2)

    # Multi-tile batch path (grid_m > 1) to exercise the batch tiling.
    B2 = 256
    x2 = jax.random.normal(kx2, (B2, C, H, W), dtype=jnp.float32)
    mu2, logvar2 = vae_encoder_forward(x2, packed_f32)
    jax.block_until_ready((mu2, logvar2))
    mu2_ref, logvar2_ref = reference_forward(x2, params)
    assert jnp.allclose(mu2, mu2_ref, atol=1e-5, rtol=1e-5)
    assert jnp.allclose(logvar2, logvar2_ref, atol=1e-5, rtol=1e-5)

    print("KERNEL_OK")
</pallas_src>

<mosaic_0001>
module attributes {stable_mosaic.version = 11 : i64} {
  func.func @vae_encoder_kernel(%arg0: i32, %arg1: i32, %arg2: memref<2x256xf32, #tpu.memory_space<vmem>>, %arg3: memref<256x128xf32, #tpu.memory_space<vmem>>, %arg4: memref<128x128xf32, #tpu.memory_space<vmem>>, %arg5: memref<128x128xf32, #tpu.memory_space<vmem>>, %arg6: memref<1x384xf32, #tpu.memory_space<vmem>>, %arg7: memref<2x128xf32, #tpu.memory_space<vmem>>, %arg8: memref<2x128xf32, #tpu.memory_space<vmem>>) attributes {dimension_semantics = [#tpu.dimension_semantics<parallel>, #tpu.dimension_semantics<arbitrary>], iteration_bounds = array<i64: 1, 1>, scalar_prefetch = 0 : i64, scratch_operands = 1 : i64, tpu.core_type = #tpu.core_type<tc>, window_params = [{transform_indices = @transform_0, window_bounds = array<i64: 2, 256>}, {transform_indices = @transform_1, window_bounds = array<i64: 256, 128>}, {pipeline_mode = #tpu.pipeline_mode<synchronous>, transform_indices = @transform_2, window_bounds = array<i64: 128, 128>}, {pipeline_mode = #tpu.pipeline_mode<synchronous>, transform_indices = @transform_3, window_bounds = array<i64: 128, 128>}, {pipeline_mode = #tpu.pipeline_mode<synchronous>, transform_indices = @transform_4, window_bounds = array<i64: 1, 384>}, {transform_indices = @transform_5, window_bounds = array<i64: 2, 128>}]} {
    %c0_i32 = arith.constant 0 : i32
    %0 = arith.cmpi eq, %arg1, %c0_i32 : i32
    %1 = arith.extui %0 : i1 to i32
    %c0_i32_0 = arith.constant 0 : i32
    %2 = arith.cmpi ne, %1, %c0_i32_0 : i32
    scf.if %2 {
      %cst_10 = arith.constant 0.000000e+00 : f32
      %12 = vector.broadcast %cst_10 : f32 to vector<2x128xf32>
      %c0_11 = arith.constant 0 : index
      %c0_12 = arith.constant 0 : index
      %13 = vector.load %arg8[%c0_11, %c0_12] : memref<2x128xf32, #tpu.memory_space<vmem>>, vector<2x128xf32>
      tpu.vector_store %arg8[%c0_11, %c0_12], %12 {strides = array<i32>} : memref<2x128xf32, #tpu.memory_space<vmem>>, vector<2x128xf32>,
    } else {
    }
    %c0 = arith.constant 0 : index
    %c0_1 = arith.constant 0 : index
    %3 = vector.load %arg8[%c0, %c0_1] : memref<2x128xf32, #tpu.memory_space<vmem>>, vector<2x128xf32>
    %c0_2 = arith.constant 0 : index
    %c0_3 = arith.constant 0 : index
    %4 = vector.load %arg2[%c0_2, %c0_3] : memref<2x256xf32, #tpu.memory_space<vmem>>, vector<2x256xf32>
    %c0_4 = arith.constant 0 : index
    %c0_5 = arith.constant 0 : index
    %5 = vector.load %arg3[%c0_4, %c0_5] : memref<256x128xf32, #tpu.memory_space<vmem>>, vector<256x128xf32>
    %cst = arith.constant dense<0.000000e+00> : vector<2x128xf32>
    %6 = tpu.matmul %4, %5, %cst {dimension_numbers = #tpu.dot_dimension_numbers<[1], [0], [0], [1], [0, 0, 1, 1], [], []>} : vector<2x256xf32>, vector<256x128xf32>, vector<2x128xf32> -> vector<2x128xf32>
    %7 = arith.addf %3, %6 : vector<2x128xf32>
    %c0_6 = arith.constant 0 : index
    %c0_7 = arith.constant 0 : index
    %8 = vector.load %arg8[%c0_6, %c0_7] : memref<2x128xf32, #tpu.memory_space<vmem>>, vector<2x128xf32>
    tpu.vector_store %arg8[%c0_6, %c0_7], %7 {strides = array<i32>} : memref<2x128xf32, #tpu.memory_space<vmem>>, vector<2x128xf32>,
    %c0_i32_8 = arith.constant 0 : i32
    %9 = arith.cmpi eq, %arg1, %c0_i32_8 : i32
    %10 = arith.extui %9 : i1 to i32
    %c0_i32_9 = arith.constant 0 : i32
    %11 = arith.cmpi ne, %10, %c0_i32_9 : i32
    scf.if %11 {
      %c0_10 = arith.constant 0 : index
      %c0_11 = arith.constant 0 : index
      %12 = vector.load %arg6[%c0_10, %c0_11] : memref<1x384xf32, #tpu.memory_space<vmem>>, vector<1x128xf32>
      %c0_12 = arith.constant 0 : index
      %c128 = arith.constant 128 : index
      %13 = vector.load %arg6[%c0_12, %c128] : memref<1x384xf32, #tpu.memory_space<vmem>>, vector<1x128xf32>
      %c0_13 = arith.constant 0 : index
      %c256 = arith.constant 256 : index
      %14 = vector.load %arg6[%c0_13, %c256] : memref<1x384xf32, #tpu.memory_space<vmem>>, vector<1x128xf32>
      %c0_14 = arith.constant 0 : index
      %c0_15 = arith.constant 0 : index
      %15 = vector.load %arg8[%c0_14, %c0_15] : memref<2x128xf32, #tpu.memory_space<vmem>>, vector<2x128xf32>
      %16 = vector.broadcast %12 : vector<1x128xf32> to vector<2x128xf32>
      %17 = arith.addf %15, %16 : vector<2x128xf32>
      %cst_16 = arith.constant 0.000000e+00 : f32
      %18 = vector.broadcast %cst_16 : f32 to vector<2x128xf32>
      %19 = arith.maximumf %17, %18 : vector<2x128xf32>
      %c0_17 = arith.constant 0 : index
      %c0_18 = arith.constant 0 : index
      %20 = vector.load %arg4[%c0_17, %c0_18] : memref<128x128xf32, #tpu.memory_space<vmem>>, vector<128x128xf32>
      %cst_19 = arith.constant dense<0.000000e+00> : vector<2x128xf32>
      %21 = tpu.matmul %19, %20, %cst_19 {dimension_numbers = #tpu.dot_dimension_numbers<[1], [0], [0], [1], [0, 0, 1, 1], [], []>} : vector<2x128xf32>, vector<128x128xf32>, vector<2x128xf32> -> vector<2x128xf32>
      %22 = vector.broadcast %13 : vector<1x128xf32> to vector<2x128xf32>
      %23 = arith.addf %21, %22 : vector<2x128xf32>
      %cst_20 = arith.constant 0.000000e+00 : f32
      %24 = vector.broadcast %cst_20 : f32 to vector<2x128xf32>
      %25 = arith.maximumf %23, %24 : vector<2x128xf32>
      %c0_21 = arith.constant 0 : index
      %c0_22 = arith.constant 0 : index
      %26 = vector.load %arg5[%c0_21, %c0_22] : memref<128x128xf32, #tpu.memory_space<vmem>>, vector<128x128xf32>
      %cst_23 = arith.constant dense<0.000000e+00> : vector<2x128xf32>
      %27 = tpu.matmul %25, %26, %cst_23 {dimension_numbers = #tpu.dot_dimension_numbers<[1], [0], [0], [1], [0, 0, 1, 1], [], []>} : vector<2x128xf32>, vector<128x128xf32>, vector<2x128xf32> -> vector<2x128xf32>
      %28 = vector.broadcast %14 : vector<1x128xf32> to vector<2x128xf32>
      %29 = arith.addf %27, %28 : vector<2x128xf32>
      %30 = tpu.iota {dimensions = array<i32: 1>} : vector<2x128xi32>
      %c32_i32 = arith.constant 32 : i32
      %31 = vector.broadcast %c32_i32 : i32 to vector<2x128xi32>
      %32 = arith.cmpi sge, %30, %31 : vector<2x128xi32>
      %cst_24 = arith.constant -1.000000e+01 : f32
      %cst_25 = arith.constant 1.000000e+01 : f32
      %33 = vector.broadcast %cst_24 : f32 to vector<2x128xf32>
      %34 = arith.maximumf %33, %29 : vector<2x128xf32>
      %35 = vector.broadcast %cst_25 : f32 to vector<2x128xf32>
      %36 = arith.minimumf %35, %34 : vector<2x128xf32>
      %37 = arith.select %32, %36, %29 : vector<2x128xi1>, vector<2x128xf32>
      %c0_26 = arith.constant 0 : index
      %c0_27 = arith.constant 0 : index
      %38 = vector.load %arg7[%c0_26, %c0_27] : memref<2x128xf32, #tpu.memory_space<vmem>>, vector<2x128xf32>
      tpu.vector_store %arg7[%c0_26, %c0_27], %37 {strides = array<i32>} : memref<2x128xf32, #tpu.memory_space<vmem>>, vector<2x128xf32>,
    } else {
    }
    return
  }
  func.func @transform_0(%arg0: i32, %arg1: i32) -> (i32, i32) {
    %c0_i32 = arith.constant 0 : i32
    return %arg0, %arg1 : i32, i32
  }
  func.func @transform_1(%arg0: i32, %arg1: i32) -> (i32, i32) {
    %c0_i32 = arith.constant 0 : i32
    %c0_i32_0 = arith.constant 0 : i32
    return %arg1, %c0_i32 : i32, i32
  }
  func.func @transform_2(%arg0: i32, %arg1: i32) -> (i32, i32) {
    %c0_i32 = arith.constant 0 : i32
    %c0_i32_0 = arith.constant 0 : i32
    %c0_i32_1 = arith.constant 0 : i32
    return %c0_i32, %c0_i32_0 : i32, i32
  }
  func.func @transform_3(%arg0: i32, %arg1: i32) -> (i32, i32) {
    %c0_i32 = arith.constant 0 : i32
    %c0_i32_0 = arith.constant 0 : i32
    %c0_i32_1 = arith.constant 0 : i32
    return %c0_i32, %c0_i32_0 : i32, i32
  }
  func.func @transform_4(%arg0: i32, %arg1: i32) -> (i32, i32) {
    %c0_i32 = arith.constant 0 : i32
    %c0_i32_0 = arith.constant 0 : i32
    %c0_i32_1 = arith.constant 0 : i32
    return %c0_i32, %c0_i32_0 : i32, i32
  }
  func.func @transform_5(%arg0: i32, %arg1: i32) -> (i32, i32) {
    %c0_i32 = arith.constant 0 : i32
    %c0_i32_0 = arith.constant 0 : i32
    return %arg0, %c0_i32 : i32, i32
  }
}

</mosaic_0001>

<llo_original>
// kernel: tpu_custom_call.1
$region0: #{tpu_custom_call.1}
  #allocation0 [shape = 'u32[]', space=smem, size = 0x4, offset = 0x4, fixed_abs, tag = 'smem constant byte address 0x4 - core index']
  #allocation1 [shape = 'u32[144,128]{1,0:T(1,128)}', space=vmem, size = 0x12000, scoped, tag = 'internal scratch']
  #allocation2 [shape = 'f32[2,128]{1,0:T(2,128)}', space=vmem, size = 0x400, scoped, tag = 'scratch operand']
  %s0 = inlined_call_operand.hbm [shape: f32[2,256], index: 0, kind: input, shape index: {}]
  %s1 = inlined_call_operand.hbm [shape: f32[256,128], index: 1, kind: input, shape index: {}]
  %s2 = inlined_call_operand.hbm [shape: f32[128,128], index: 2, kind: input, shape index: {}]
  %s3 = inlined_call_operand.hbm [shape: f32[128,128], index: 3, kind: input, shape index: {}]
  %s4 = inlined_call_operand.vmem [shape: f32[1,384], index: 4, kind: input, shape index: {}]
  %s5 = inlined_call_operand.hbm [shape: f32[2,128], index: 5, kind: output, shape index: {}]
  %s6 = sld [smem:[#allocation0]]
  $region54: #{tpu_custom_call.1} parent=0
    _
  %s8 = ssub.s32 1, %s6
  %s9 = scalar_select 0, %s8, %s6
  $region1: #{tpu_custom_call.1} parent=0
    #allocation3 [shape = 'u8[2048]{0}', space=vmem, size = 0x800, scoped, tag = 'input window, operand 0, single buffered']
    #allocation4 [shape = 's32[1]{0}', space=sflag, size = 0x4, scoped, tag = 'scoped memory for tpu_custom_call.1']
    #allocation5 [shape = 's32[1]{0}', space=sflag, size = 0x4, scoped, tag = 'scoped memory for tpu_custom_call.1']
    #allocation6 [shape = 'u8[131072]{0}', space=vmem, size = 0x20000, scoped, tag = 'input window, operand 1, single buffered']
    #allocation7 [shape = 's32[1]{0}', space=sflag, size = 0x4, scoped, tag = 'scoped memory for tpu_custom_call.1']
    #allocation8 [shape = 'u8[65536]{0}', space=vmem, size = 0x10000, scoped, tag = 'input window, operand 2, single buffered']
    #allocation9 [shape = 'u8[65536]{0}', space=vmem, size = 0x10000, scoped, tag = 'input window, operand 3, single buffered']
    #allocation10 [shape = 's32[1]{0}', space=sflag, size = 0x4, scoped, tag = 'scoped memory for tpu_custom_call.1']
    #allocation11 [shape = 'u8[1024]{0}', space=vmem, size = 0x400, scoped, tag = 'output window, operand 0, single buffered']
    %10 = vsyncpa [#allocation4], 0
    %11 = vsyncpa [#allocation7], 0
    %12 = vsyncpa [#allocation10], 0
    %13 = vsyncpa [#allocation5], 0
    // Predicated region
    $region2: #{tpu_custom_call.1} parent=1 // pred_check
      _
    $region3: #{tpu_custom_call.1} parent=1 // pred_check_branch
      %15 = sbr.rel (0) target = $region5
    $region4: #{tpu_custom_call.1} parent=1 // pred_region
      %s17 = ssub.s32 64, 64
      %18 = vsyncadd [#allocation4], %s17
      %s20 = sshll.u32 [#allocation3], 4
      %s21 = int_to_ptr.vmem [resolvable:$true] %s20
      %23 = dma.hbm_to_vmem [thread:$0]  %s0, 64, %s21, [#allocation4]
    $region5: #{tpu_custom_call.1} parent=1 // pred_fallthru
      _
    // Predicated region
    $region6: #{tpu_custom_call.1} parent=1 // pred_check
      _
    $region7: #{tpu_custom_call.1} parent=1 // pred_check_branch
      %25 = sbr.rel (0) target = $region9
    $region8: #{tpu_custom_call.1} parent=1 // pred_region
      %s27 = ssub.s32 4096, 4096
      %28 = vsyncadd [#allocation7], %s27
      %s29 = sshll.u32 [#allocation6], 4
      %s30 = int_to_ptr.vmem [resolvable:$true] %s29
      %35 = dma.hbm_to_vmem [thread:$0]  %s1, 4096, %s30, [#allocation7], 128, 128, 8
    $region9: #{tpu_custom_call.1} parent=1 // pred_fallthru
      _
    // Predicated region
    $region10: #{tpu_custom_call.1} parent=1 // pred_check
      _
    $region11: #{tpu_custom_call.1} parent=1 // pred_check_branch
      %37 = sbr.rel (0) target = $region13
    $region12: #{tpu_custom_call.1} parent=1 // pred_region
      %s39 = ssub.s32 2048, 2048
      %40 = vsyncadd [#allocation7], %s39
      %s41 = sshll.u32 [#allocation8], 4
      %s42 = int_to_ptr.vmem [resolvable:$true] %s41
      %47 = dma.hbm_to_vmem [thread:$0]  %s2, 2048, %s42, [#allocation7], 128, 128, 8
    $region13: #{tpu_custom_call.1} parent=1 // pred_fallthru
      _
    // Predicated region
    $region14: #{tpu_custom_call.1} parent=1 // pred_check
      _
    $region15: #{tpu_custom_call.1} parent=1 // pred_check_branch
      %49 = sbr.rel (0) target = $region17
    $region16: #{tpu_custom_call.1} parent=1 // pred_region
      %s51 = ssub.s32 2048, 2048
      %52 = vsyncadd [#allocation10], %s51
      %s53 = sshll.u32 [#allocation9], 4
      %s54 = int_to_ptr.vmem [resolvable:$true] %s53
      %59 = dma.hbm_to_vmem [thread:$0]  %s3, 2048, %s54, [#allocation10], 128, 128, 8
    $region17: #{tpu_custom_call.1} parent=1 // pred_fallthru
      _
    // Predicated region
    $region18: #{tpu_custom_call.1} parent=1 // pred_check
      _
    $region19: #{tpu_custom_call.1} parent=1 // pred_check_branch
      %61 = sbr.rel (0) target = $region21
    $region20: #{tpu_custom_call.1} parent=1 // pred_region
      _
    $region21: #{tpu_custom_call.1} parent=1 // pred_fallthru
      _
    // Predicated region
    $region22: #{tpu_custom_call.1} parent=1 // pred_check
      _
    $region23: #{tpu_custom_call.1} parent=1 // pred_check_branch
      %63 = sbr.rel (0) target = $region25
    $region24: #{tpu_custom_call.1} parent=1 // pred_region
      %64 = dma.done [#allocation4], 64
    $region25: #{tpu_custom_call.1} parent=1 // pred_fallthru
      _
    // Predicated region
    $region26: #{tpu_custom_call.1} parent=1 // pred_check
      _
    $region27: #{tpu_custom_call.1} parent=1 // pred_check_branch
      %66 = sbr.rel (0) target = $region29
    $region28: #{tpu_custom_call.1} parent=1 // pred_region
      %67 = dma.done [#allocation7], 4096
    $region29: #{tpu_custom_call.1} parent=1 // pred_fallthru
      _
    // Predicated region
    $region30: #{tpu_custom_call.1} parent=1 // pred_check
      _
    $region31: #{tpu_custom_call.1} parent=1 // pred_check_branch
      %69 = sbr.rel (0) target = $region33
    $region32: #{tpu_custom_call.1} parent=1 // pred_region
      %70 = dma.done [#allocation7], 2048
    $region33: #{tpu_custom_call.1} parent=1 // pred_fallthru
      _
    // Predicated region
    $region34: #{tpu_custom_call.1} parent=1 // pred_check
      _
    $region35: #{tpu_custom_call.1} parent=1 // pred_check_branch
      %72 = sbr.rel (0) target = $region37
    $region36: #{tpu_custom_call.1} parent=1 // pred_region
      %73 = dma.done [#allocation10], 2048
    $region37: #{tpu_custom_call.1} parent=1 // pred_fallthru
      _
    %p74 = scmp.eq.s32.totalorder 0, 0
    // Predicated region
    $region38: #{tpu_custom_call.1} parent=1 // pred_check
      %p75 = pneg %p74
    $region39: #{tpu_custom_call.1} parent=1 // pred_check_branch
      %77 = sbr.rel (%p75) target = $region41
    $region40: #{tpu_custom_call.1} parent=1 // pred_region
      %78 = vst [vmem:[#allocation2] sm:$0x3] 0.0
    $region41: #{tpu_custom_call.1} parent=1 // pred_fallthru
      _
    %v79 = vld [vmem:[#allocation2] sm:$0x3]
    %v80 = vld [vmem:[#allocation3] sm:$0xf]
    %v81 = vld [vmem:[#allocation6] sm:$0xff]
    %v82 = vld [vmem:[#allocation6 + $0x8] sm:$0xff]
    %v83 = vld [vmem:[#allocation6 + $0x10] sm:$0xff]
    %v84 = vld [vmem:[#allocation6 + $0x18] sm:$0xff]
    %v85 = vld [vmem:[#allocation6 + $0x20] sm:$0xff]
    %v86 = vld [vmem:[#allocation6 + $0x28] sm:$0xff]
    %v87 = vld [vmem:[#allocation6 + $0x30] sm:$0xff]
    %v88 = vld [vmem:[#allocation6 + $0x38] sm:$0xff]
    %v89 = vld [vmem:[#allocation6 + $0x40] sm:$0xff]
    %v90 = vld [vmem:[#allocation6 + $0x48] sm:$0xff]
    %v91 = vld [vmem:[#allocation6 + $0x50] sm:$0xff]
    %v92 = vld [vmem:[#allocation6 + $0x58] sm:$0xff]
    %v93 = vld [vmem:[#allocation6 + $0x60] sm:$0xff]
    %v94 = vld [vmem:[#allocation6 + $0x68] sm:$0xff]
    %v95 = vld [vmem:[#allocation6 + $0x70] sm:$0xff]
    %v96 = vld [vmem:[#allocation6 + $0x78] sm:$0xff]
    %v97 = vld [vmem:[#allocation6 + $0x80] sm:$0xff]
    %v98 = vld [vmem:[#allocation6 + $0x88] sm:$0xff]
    %v99 = vld [vmem:[#allocation6 + $0x90] sm:$0xff]
    %v100 = vld [vmem:[#allocation6 + $0x98] sm:$0xff]
    %v101 = vld [vmem:[#allocation6 + $0xa0] sm:$0xff]
    %v102 = vld [vmem:[#allocation6 + $0xa8] sm:$0xff]
    %v103 = vld [vmem:[#allocation6 + $0xb0] sm:$0xff]
    %v104 = vld [vmem:[#allocation6 + $0xb8] sm:$0xff]
    %v105 = vld [vmem:[#allocation6 + $0xc0] sm:$0xff]
    %v106 = vld [vmem:[#allocation6 + $0xc8] sm:$0xff]
    %v107 = vld [vmem:[#allocation6 + $0xd0] sm:$0xff]
    %v108 = vld [vmem:[#allocation6 + $0xd8] sm:$0xff]
    %v109 = vld [vmem:[#allocation6 + $0xe0] sm:$0xff]
    %v110 = vld [vmem:[#allocation6 + $0xe8] sm:$0xff]
    %v111 = vld [vmem:[#allocation6 + $0xf0] sm:$0xff]
    %v112 = vld [vmem:[#allocation6 + $0xf8] sm:$0xff]
    %v115 = vunpack.c.l.s4 1983009808
    %v116 = vunpack.c.0.s8 %v115
    %v117 = vlaneseq
    %v118 = vshrl.u32 %v117, 7
    %v119 = vsub.s32 %v116, %v118
    %v120 = vrot.slane %v80, %v119
    %v121 = vcombine.high %v120, %v120
    %124 = vmatprep.subr.mxu0 0.0
    %125 = vmatpush1.msra.mxu0 %v96
    %126 = vmatprep.subr.mxu0 0.0
    %127 = vmatpush1.msra.mxu0 %v95
    %128 = vmatprep.subr.mxu0 0.0
    %129 = vmatpush1.msra.mxu0 %v94
    %130 = vmatprep.subr.mxu0 0.0
    %131 = vmatpush1.msra.mxu0 %v93
    %132 = vmatprep.subr.mxu0 0.0
    %133 = vmatpush1.msra.mxu0 %v92
    %134 = vmatprep.subr.mxu0 0.0
    %135 = vmatpush1.msra.mxu0 %v91
    %136 = vmatprep.subr.mxu0 0.0
    %137 = vmatpush1.msra.mxu0 %v90
    %138 = vmatprep.subr.mxu0 0.0
    %139 = vmatpush1.msra.mxu0 %v89
    %140 = vmatprep.subr.mxu0 0.0
    %141 = vmatpush1.msra.mxu0 %v88
    %142 = vmatprep.subr.mxu0 0.0
    %143 = vmatpush1.msra.mxu0 %v87
    %144 = vmatprep.subr.mxu0 0.0
    %145 = vmatpush1.msra.mxu0 %v86
    %146 = vmatprep.subr.mxu0 0.0
    %147 = vmatpush1.msra.mxu0 %v85
    %148 = vmatprep.subr.mxu0 0.0
    %149 = vmatpush1.msra.mxu0 %v84
    %150 = vmatprep.subr.mxu0 0.0
    %151 = vmatpush1.msra.mxu0 %v83
    %152 = vmatprep.subr.mxu0 0.0
    %153 = vmatpush1.msra.mxu0 %v82
    %154 = vmatprep.subr.mxu0 0.0
    %155 = vmatpush1.msra.mxu0 %v81
    %156 = vmatprep.subr.mxu0 0.0
    %157 = vmatpush2.msra.mxu0 %v112
    %158 = vmatprep.subr.mxu0 0.0
    %159 = vmatpush2.msra.mxu0 %v111
    %160 = vmatprep.subr.mxu0 0.0
    %161 = vmatpush2.msra.mxu0 %v110
    %162 = vmatprep.subr.mxu0 0.0
    %163 = vmatpush2.msra.mxu0 %v109
    %164 = vmatprep.subr.mxu0 0.0
    %165 = vmatpush2.msra.mxu0 %v108
    %166 = vmatprep.subr.mxu0 0.0
    %167 = vmatpush2.msra.mxu0 %v107
    %168 = vmatprep.subr.mxu0 0.0
    %169 = vmatpush2.msra.mxu0 %v106
    %170 = vmatprep.subr.mxu0 0.0
    %171 = vmatpush2.msra.mxu0 %v105
    %172 = vmatprep.subr.mxu0 0.0
    %173 = vmatpush2.msra.mxu0 %v104
    %174 = vmatprep.subr.mxu0 0.0
    %175 = vmatpush2.msra.mxu0 %v103
    %176 = vmatprep.subr.mxu0 0.0
    %177 = vmatpush2.msra.mxu0 %v102
    %178 = vmatprep.subr.mxu0 0.0
    %179 = vmatpush2.msra.mxu0 %v101
    %180 = vmatprep.subr.mxu0 0.0
    %181 = vmatpush2.msra.mxu0 %v100
    %182 = vmatprep.subr.mxu0 0.0
    %183 = vmatpush2.msra.mxu0 %v99
    %184 = vmatprep.subr.mxu0 0.0
    %185 = vmatpush2.msra.mxu0 %v98
    %186 = vmatprep.subr.mxu0 0.0
    %187 = vmatpush2.msra.mxu0 %v97
    %188 = vmatprep.mubr.f32.mxu0 %v121
    %189 = vmatmul.mubr.f32.gmra.mxu0 %v120
    %v190 = vpop.f32.mrf.mxu0
    %v191 = vadd.f32 0.0, %v190
    %v192 = vpop.f32.mrf.mxu0
    %193 = vdwg.mxu0
    %v194 = vadd.f32 %v79, %v191
    %195 = vst [vmem:[#allocation2] sm:$0x3] %v194
    // Predicated region
    $region42: #{tpu_custom_call.1} parent=1 // pred_check
      %p196 = pneg %p74
    $region43: #{tpu_custom_call.1} parent=1 // pred_check_branch
      %198 = sbr.rel (%p196) target = $region45
    $region44: #{tpu_custom_call.1} parent=1 // pred_region
      %v199 = vld [vmem:[%s4] sm:$0x1]
      %v200 = vld [vmem:[%s4 + $0x1] sm:$0x1]
      %v201 = vld [vmem:[%s4 + $0x2] sm:$0x1]
      %v202 = vld [vmem:[#allocation2] sm:$0x3]
      %v204 = vlaneseq
      %v205 = vshrl.u32 %v204, 7
      %v206 = vsub.s32 0, %v205
      %v207 = vrot.slane %v199, %v206
      %v209 = vadd.f32 %v202, %v207
      %v210 = vmax.f32 %v209, 0.0
      %v211 = vld [vmem:[#allocation8] sm:$0xff]
      %v212 = vld [vmem:[#allocation8 + $0x8] sm:$0xff]
      %v213 = vld [vmem:[#allocation8 + $0x10] sm:$0xff]
      %v214 = vld [vmem:[#allocation8 + $0x18] sm:$0xff]
      %v215 = vld [vmem:[#allocation8 + $0x20] sm:$0xff]
      %v216 = vld [vmem:[#allocation8 + $0x28] sm:$0xff]
      %v217 = vld [vmem:[#allocation8 + $0x30] sm:$0xff]
      %v218 = vld [vmem:[#allocation8 + $0x38] sm:$0xff]
      %v219 = vld [vmem:[#allocation8 + $0x40] sm:$0xff]
      %v220 = vld [vmem:[#allocation8 + $0x48] sm:$0xff]
      %v221 = vld [vmem:[#allocation8 + $0x50] sm:$0xff]
      %v222 = vld [vmem:[#allocation8 + $0x58] sm:$0xff]
      %v223 = vld [vmem:[#allocation8 + $0x60] sm:$0xff]
      %v224 = vld [vmem:[#allocation8 + $0x68] sm:$0xff]
      %v225 = vld [vmem:[#allocation8 + $0x70] sm:$0xff]
      %v226 = vld [vmem:[#allocation8 + $0x78] sm:$0xff]
      %v228 = vlaneseq
      %v229 = vshrl.u32 %v228, 7
      %v230 = vsub.s32 0, %v229
      %v231 = vrot.slane %v200, %v230
      %233 = vmatprep.subr.mxu0 0.0
      %234 = vmatpush1.msra.mxu0 %v226
      %235 = vmatprep.subr.mxu0 0.0
      %236 = vmatpush1.msra.mxu0 %v225
      %237 = vmatprep.subr.mxu0 0.0
      %238 = vmatpush1.msra.mxu0 %v224
      %239 = vmatprep.subr.mxu0 0.0
      %240 = vmatpush1.msra.mxu0 %v223
      %241 = vmatprep.subr.mxu0 0.0
      %242 = vmatpush1.msra.mxu0 %v222
      %243 = vmatprep.subr.mxu0 0.0
      %244 = vmatpush1.msra.mxu0 %v221
      %245 = vmatprep.subr.mxu0 0.0
      %246 = vmatpush1.msra.mxu0 %v220
      %247 = vmatprep.subr.mxu0 0.0
      %248 = vmatpush1.msra.mxu0 %v219
      %249 = vmatprep.subr.mxu0 0.0
      %250 = vmatpush1.msra.mxu0 %v218
      %251 = vmatprep.subr.mxu0 0.0
      %252 = vmatpush1.msra.mxu0 %v217
      %253 = vmatprep.subr.mxu0 0.0
      %254 = vmatpush1.msra.mxu0 %v216
      %255 = vmatprep.subr.mxu0 0.0
      %256 = vmatpush1.msra.mxu0 %v215
      %257 = vmatprep.subr.mxu0 0.0
      %258 = vmatpush1.msra.mxu0 %v214
      %259 = vmatprep.subr.mxu0 0.0
      %260 = vmatpush1.msra.mxu0 %v213
      %261 = vmatprep.subr.mxu0 0.0
      %262 = vmatpush1.msra.mxu0 %v212
      %263 = vmatprep.subr.mxu0 0.0
      %264 = vmatpush1.msra.mxu0 %v211
      %265 = vmatprep.subr.mxu0 0.0
      %266 = vmatpush2.msra.mxu0 0.0
      %267 = vmatprep.subr.mxu0 0.0
      %268 = vmatpush2.msra.mxu0 0.0
      %269 = vmatprep.subr.mxu0 0.0
      %270 = vmatpush2.msra.mxu0 0.0
      %271 = vmatprep.subr.mxu0 0.0
      %272 = vmatpush2.msra.mxu0 0.0
      %273 = vmatprep.subr.mxu0 0.0
      %274 = vmatpush2.msra.mxu0 0.0
      %275 = vmatprep.subr.mxu0 0.0
      %276 = vmatpush2.msra.mxu0 0.0
      %277 = vmatprep.subr.mxu0 0.0
      %278 = vmatpush2.msra.mxu0 0.0
      %279 = vmatprep.subr.mxu0 0.0
      %280 = vmatpush2.msra.mxu0 0.0
      %281 = vmatprep.subr.mxu0 0.0
      %282 = vmatpush2.msra.mxu0 0.0
      %283 = vmatprep.subr.mxu0 0.0
      %284 = vmatpush2.msra.mxu0 0.0
      %285 = vmatprep.subr.mxu0 0.0
      %286 = vmatpush2.msra.mxu0 0.0
      %287 = vmatprep.subr.mxu0 0.0
      %288 = vmatpush2.msra.mxu0 0.0
      %289 = vmatprep.subr.mxu0 0.0
      %290 = vmatpush2.msra.mxu0 0.0
      %291 = vmatprep.subr.mxu0 0.0
      %292 = vmatpush2.msra.mxu0 0.0
      %293 = vmatprep.subr.mxu0 0.0
      %294 = vmatpush2.msra.mxu0 0.0
      %295 = vmatprep.subr.mxu0 0.0
      %296 = vmatpush2.msra.mxu0 0.0
      %297 = vmatprep.mubr.f32.mxu0 0.0
      %298 = vmatmul.mubr.f32.gmra.mxu0 %v210
      %v299 = vpop.f32.mrf.mxu0
      %v300 = vadd.f32 %v231, %v299
      %v301 = vpop.f32.mrf.mxu0
      %302 = vdwg.mxu0
      %v303 = vmax.f32 %v300, 0.0
      %v304 = vld [vmem:[#allocation9] sm:$0xff]
      %v305 = vld [vmem:[#allocation9 + $0x8] sm:$0xff]
      %v306 = vld [vmem:[#allocation9 + $0x10] sm:$0xff]
      %v307 = vld [vmem:[#allocation9 + $0x18] sm:$0xff]
      %v308 = vld [vmem:[#allocation9 + $0x20] sm:$0xff]
      %v309 = vld [vmem:[#allocation9 + $0x28] sm:$0xff]
      %v310 = vld [vmem:[#allocation9 + $0x30] sm:$0xff]
      %v311 = vld [vmem:[#allocation9 + $0x38] sm:$0xff]
      %v312 = vld [vmem:[#allocation9 + $0x40] sm:$0xff]
      %v313 = vld [vmem:[#allocation9 + $0x48] sm:$0xff]
      %v314 = vld [vmem:[#allocation9 + $0x50] sm:$0xff]
      %v315 = vld [vmem:[#allocation9 + $0x58] sm:$0xff]
      %v316 = vld [vmem:[#allocation9 + $0x60] sm:$0xff]
      %v317 = vld [vmem:[#allocation9 + $0x68] sm:$0xff]
      %v318 = vld [vmem:[#allocation9 + $0x70] sm:$0xff]
      %v319 = vld [vmem:[#allocation9 + $0x78] sm:$0xff]
      %v321 = vlaneseq
      %v322 = vshrl.u32 %v321, 7
      %v323 = vsub.s32 0, %v322
      %v324 = vrot.slane %v201, %v323
      %326 = vmatprep.subr.mxu0 0.0
      %327 = vmatpush1.msra.mxu0 %v319
      %328 = vmatprep.subr.mxu0 0.0
      %329 = vmatpush1.msra.mxu0 %v318
      %330 = vmatprep.subr.mxu0 0.0
      %331 = vmatpush1.msra.mxu0 %v317
      %332 = vmatprep.subr.mxu0 0.0
      %333 = vmatpush1.msra.mxu0 %v316
      %334 = vmatprep.subr.mxu0 0.0
      %335 = vmatpush1.msra.mxu0 %v315
      %336 = vmatprep.subr.mxu0 0.0
      %337 = vmatpush1.msra.mxu0 %v314
      %338 = vmatprep.subr.mxu0 0.0
      %339 = vmatpush1.msra.mxu0 %v313
      %340 = vmatprep.subr.mxu0 0.0
      %341 = vmatpush1.msra.mxu0 %v312
      %342 = vmatprep.subr.mxu0 0.0
      %343 = vmatpush1.msra.mxu0 %v311
      %344 = vmatprep.subr.mxu0 0.0
      %345 = vmatpush1.msra.mxu0 %v310
      %346 = vmatprep.subr.mxu0 0.0
      %347 = vmatpush1.msra.mxu0 %v309
      %348 = vmatprep.subr.mxu0 0.0
      %349 = vmatpush1.msra.mxu0 %v308
      %350 = vmatprep.subr.mxu0 0.0
      %351 = vmatpush1.msra.mxu0 %v307
      %352 = vmatprep.subr.mxu0 0.0
      %353 = vmatpush1.msra.mxu0 %v306
      %354 = vmatprep.subr.mxu0 0.0
      %355 = vmatpush1.msra.mxu0 %v305
      %356 = vmatprep.subr.mxu0 0.0
      %357 = vmatpush1.msra.mxu0 %v304
      %358 = vmatprep.subr.mxu0 0.0
      %359 = vmatpush2.msra.mxu0 0.0
      %360 = vmatprep.subr.mxu0 0.0
      %361 = vmatpush2.msra.mxu0 0.0
      %362 = vmatprep.subr.mxu0 0.0
      %363 = vmatpush2.msra.mxu0 0.0
      %364 = vmatprep.subr.mxu0 0.0
      %365 = vmatpush2.msra.mxu0 0.0
      %366 = vmatprep.subr.mxu0 0.0
      %367 = vmatpush2.msra.mxu0 0.0
      %368 = vmatprep.subr.mxu0 0.0
      %369 = vmatpush2.msra.mxu0 0.0
      %370 = vmatprep.subr.mxu0 0.0
      %371 = vmatpush2.msra.mxu0 0.0
      %372 = vmatprep.subr.mxu0 0.0
      %373 = vmatpush2.msra.mxu0 0.0
      %374 = vmatprep.subr.mxu0 0.0
      %375 = vmatpush2.msra.mxu0 0.0
      %376 = vmatprep.subr.mxu0 0.0
      %377 = vmatpush2.msra.mxu0 0.0
      %378 = vmatprep.subr.mxu0 0.0
      %379 = vmatpush2.msra.mxu0 0.0
      %380 = vmatprep.subr.mxu0 0.0
      %381 = vmatpush2.msra.mxu0 0.0
      %382 = vmatprep.subr.mxu0 0.0
      %383 = vmatpush2.msra.mxu0 0.0
      %384 = vmatprep.subr.mxu0 0.0
      %385 = vmatpush2.msra.mxu0 0.0
      %386 = vmatprep.subr.mxu0 0.0
      %387 = vmatpush2.msra.mxu0 0.0
      %388 = vmatprep.subr.mxu0 0.0
      %389 = vmatpush2.msra.mxu0 0.0
      %390 = vmatprep.mubr.f32.mxu0 0.0
      %391 = vmatmul.mubr.f32.gmra.mxu0 %v303
      %v392 = vpop.f32.mrf.mxu0
      %v393 = vadd.f32 %v324, %v392
      %v394 = vpop.f32.mrf.mxu0
      %395 = vdwg.mxu0
      %v396 = vlaneseq
      %v397 = vand.u32 %v396, 127
      %vm398 = vcmp.ge.s32.totalorder %v397, 32
      %v399 = vmax.f32 %v393, -10.0
      %v400 = vmin.f32 %v399, 10.0
      %v401 = vsel %vm398, %v400, %v393
      %402 = vst [vmem:[#allocation11] sm:$0x3] %v401
    $region45: #{tpu_custom_call.1} parent=1 // pred_fallthru
      _
    // Predicated region
    $region46: #{tpu_custom_call.1} parent=1 // pred_check
      _
    $region47: #{tpu_custom_call.1} parent=1 // pred_check_branch
      %404 = sbr.rel (0) target = $region49
    $region48: #{tpu_custom_call.1} parent=1 // pred_region
      %s406 = ssub.s32 32, 32
      %407 = vsyncadd [#allocation5], %s406
      %s409 = sshll.u32 [#allocation11], 4
      %s410 = int_to_ptr.vmem [resolvable:$true] %s409
      %412 = dma.vmem_to_hbm [thread:$0]  %s410, 32, %s5, [#allocation5]
    $region49: #{tpu_custom_call.1} parent=1 // pred_fallthru
      _
    // Predicated region
    $region50: #{tpu_custom_call.1} parent=1 // pred_check
      _
    $region51: #{tpu_custom_call.1} parent=1 // pred_check_branch
      %414 = sbr.rel (0) target = $region53
    $region52: #{tpu_custom_call.1} parent=1 // pred_region
      %415 = dma.done [#allocation5], 32
    $region53: #{tpu_custom_call.1} parent=1 // pred_fallthru
      _
    %416 = vsyncpa [#allocation4], 1
    %417 = vsyncpa [#allocation7], 1
    %418 = vsyncpa [#allocation10], 1
    %419 = vsyncpa [#allocation5], 1

</llo_original>
